<compile_context>
chip_gen: v6e
topology: v6e:2x2x1
jax: 0.10.0
libtpu: 0.0.40
codegen_flags: <defaults>
</compile_context>

<pallas_src>
import jax
import jax.numpy as jnp
from jax.experimental import pallas as pl
from jax.experimental.pallas import tpu as pltpu


_SUBLANE = {4: 8, 2: 16, 1: 32}


def _round_up(x, m):
    return ((x + m - 1) // m) * m


def _vmem_capacity_bytes():
    """Physical VMEM per TensorCore; conservative 64 MiB (v7x) fallback."""
    try:
        cap = int(pltpu.get_tpu_info().vmem_capacity_bytes)
        if cap >= (16 << 20):
            return cap
    except Exception:
        pass
    return 64 << 20


# --------------------------------------------------------------------------
# Kernels
# --------------------------------------------------------------------------

def _mlp_kernel_resident(x_ref, w1_ref, b1_ref, w2_ref, b2_ref, o_ref):
    """Whole W1/W2 resident in VMEM; grid = (batch_tiles,)."""
    h = jnp.dot(x_ref[...], w1_ref[...], preferred_element_type=jnp.float32)
    h = jnp.maximum(h + b1_ref[...].astype(jnp.float32), 0.0)
    out = jnp.dot(h.astype(w2_ref.dtype), w2_ref[...],
                  preferred_element_type=jnp.float32)
    o_ref[...] = (out + b2_ref[...].astype(jnp.float32)).astype(o_ref.dtype)


def _mlp_kernel_tiled(x_ref, w1_ref, b1_ref, w2_ref, b2_ref, o_ref, acc_ref):
    """Hidden dim tiled as a reduction; grid = (batch_tiles, hidden_tiles)."""
    hk = pl.program_id(1)

    @pl.when(hk == 0)
    def _init():
        # Initialize the accumulator with b2: saves the epilogue bias add.
        acc_ref[...] = jnp.broadcast_to(
            b2_ref[...].astype(jnp.float32), acc_ref.shape)

    # fc1 chunk: (tb, D_in) @ (D_in, tH) on the MXU, bias + ReLU on the VPU.
    h = jnp.dot(x_ref[...], w1_ref[...], preferred_element_type=jnp.float32)
    h = jnp.maximum(h + b1_ref[...].astype(jnp.float32), 0.0)

    # fc2 partial: (tb, tH) @ (tH, D_out) accumulated into f32 VMEM scratch.
    acc_ref[...] += jnp.dot(h.astype(w2_ref.dtype), w2_ref[...],
                            preferred_element_type=jnp.float32)

    @pl.when(hk == pl.num_programs(1) - 1)
    def _finalize():
        o_ref[...] = acc_ref[...].astype(o_ref.dtype)


# --------------------------------------------------------------------------
# Wrapper
# --------------------------------------------------------------------------

def mlp_forward(x, w1, b1, w2, b2, *, block_batch=None, block_hidden=None,
                compute_dtype=None):
    B, D_in = x.shape
    D_in_w, H = w1.shape
    H_w, D_out = w2.shape
    assert D_in == D_in_w and H == H_w, "weight shapes must match x"

    out_dtype = x.dtype
    if compute_dtype is not None:
        # bf16 matmul path: halves HBM/DMA bytes, f32 accumulation retained.
        x = x.astype(compute_dtype)
        w1 = w1.astype(compute_dtype)
        w2 = w2.astype(compute_dtype)
    itemsize = jnp.dtype(x.dtype).itemsize
    out_itemsize = jnp.dtype(out_dtype).itemsize
    sub = _SUBLANE.get(itemsize, 8)

    b1 = b1.reshape(1, H).astype(jnp.float32)
    b2 = b2.reshape(1, D_out).astype(jnp.float32)
    b_itemsize = 4

    # Lane-dense output: pad D_out to a multiple of 128 (masked partial stores
    # and an under-filled MXU N dim cost far more than a wrapper-side slice).
    D_out_p = _round_up(D_out, 128)
    if D_out_p != D_out:
        w2 = jnp.pad(w2, ((0, 0), (0, D_out_p - D_out)))
        b2 = jnp.pad(b2, ((0, 0), (0, D_out_p - D_out)))

    vmem_cap = _vmem_capacity_bytes()
    budget = int(vmem_cap * 0.8)

    w_bytes = itemsize * (D_in * H + H * D_out_p)
    bias_bytes = b_itemsize * (H + D_out_p)

    # Weight-resident fast path: weights (double-buffer allowance included)
    # must fit in ~half the VMEM budget.
    resident = (block_hidden is None) and (2 * (w_bytes + bias_bytes) <= budget // 2)

    if resident:
        # ---------------- weights live in VMEM; grid = (batch tiles,) -------
        per_row = (2 * itemsize * D_in            # x row, double-buffered
                   + 2 * out_itemsize * D_out_p   # out row, double-buffered
                   + 4 * H + 4 * D_out_p)         # f32 intermediates
        if block_batch is None:
            avail = budget - 2 * (w_bytes + bias_bytes)
            bb = max(sub, (avail // per_row) // sub * sub)
            bb = min(bb, 512)
            if B >= 2 * sub:
                # Keep >= 2 batch tiles so the "parallel" axis pipelines and
                # can shard across the 2 TensorCores on v7x.
                bb = min(bb, _round_up(-(-B // 2), sub))
            block_batch = min(bb, _round_up(B, sub))
        else:
            block_batch = max(sub, _round_up(block_batch, sub))

        B_p = _round_up(B, block_batch)
        if B_p != B:
            x = jnp.pad(x, ((0, B_p - B), (0, 0)))
        n_bt = B_p // block_batch

        flops = 2 * B_p * (D_in * H + H * D_out_p)
        bytes_accessed = (itemsize * B_p * D_in + w_bytes + bias_bytes
                          + out_itemsize * B_p * D_out_p)
        usage = 2 * (w_bytes + bias_bytes) + block_batch * per_row
        vmem_limit = int(min(vmem_cap - (4 << 20),
                             max(usage + (8 << 20), 32 << 20)))

        out = pl.pallas_call(
            _mlp_kernel_resident,
            out_shape=jax.ShapeDtypeStruct((B_p, D_out_p), out_dtype),
            grid_spec=pltpu.PrefetchScalarGridSpec(
                num_scalar_prefetch=0,
                grid=(n_bt,),
                in_specs=[
                    pl.BlockSpec((block_batch, D_in), lambda i: (i, 0)),  # x
                    pl.BlockSpec((D_in, H), lambda i: (0, 0)),            # W1 (resident)
                    pl.BlockSpec((1, H), lambda i: (0, 0)),               # b1
                    pl.BlockSpec((H, D_out_p), lambda i: (0, 0)),         # W2 (resident)
                    pl.BlockSpec((1, D_out_p), lambda i: (0, 0)),         # b2
                ],
                out_specs=pl.BlockSpec((block_batch, D_out_p), lambda i: (i, 0)),
            ),
            compiler_params=pltpu.CompilerParams(
                dimension_semantics=("parallel",),
                vmem_limit_bytes=vmem_limit,
            ),
            cost_estimate=pl.CostEstimate(
                flops=flops, transcendentals=0, bytes_accessed=bytes_accessed),
        )(x, w1, b1, w2, b2)

    else:
        # ---------------- hidden dim tiled as an "arbitrary" reduction ------
        def hidden_cap(bb_):
            fixed = (2 * itemsize * bb_ * D_in
                     + 2 * out_itemsize * bb_ * D_out_p
                     + 4 * bb_ * D_out_p
                     + 2 * b_itemsize * D_out_p)
            per_col = 2 * itemsize * (D_in + D_out_p) + 2 * b_itemsize + 4 * bb_
            return (budget - fixed) // per_col

        user_bb = block_batch
        if user_bb is None:
            bb = min(256, _round_up(B, sub))
            while bb > sub and hidden_cap(bb) < 256:
                bb = max(sub, ((bb // 2) // sub) * sub)
        else:
            bb = max(sub, _round_up(user_bb, sub))
        block_batch = bb

        if block_hidden is None:
            cap = hidden_cap(block_batch)
            # Prefer 256 alignment (v6e/v7x 2x256x256 MXU), fall back to 128.
            align = 256 if cap >= 256 else 128
            bh = max(align, (cap // align) * align)
            block_hidden = min(bh, _round_up(H, align))
        else:
            block_hidden = max(128, _round_up(block_hidden, 128))

        B_p = _round_up(B, block_batch)
        H_p = _round_up(H, block_hidden)
        if B_p != B:
            x = jnp.pad(x, ((0, B_p - B), (0, 0)))
        if H_p != H:
            # Zero padding is exact: relu(x@0 + 0) = 0 contributes 0 via W2=0.
            w1 = jnp.pad(w1, ((0, 0), (0, H_p - H)))
            b1 = jnp.pad(b1, ((0, 0), (0, H_p - H)))
            w2 = jnp.pad(w2, ((0, H_p - H), (0, 0)))

        n_bt = B_p // block_batch
        n_ht = H_p // block_hidden

        flops = 2 * B_p * (D_in * H_p + H_p * D_out_p)
        # Weights are re-streamed once per batch tile under this grid.
        bytes_accessed = (itemsize * B_p * D_in
                          + n_bt * (itemsize * (D_in * H_p + H_p * D_out_p)
                                    + b_itemsize * (H_p + D_out_p))
                          + out_itemsize * B_p * D_out_p)
        usage = (2 * itemsize * block_batch * D_in
                 + 2 * itemsize * (D_in * block_hidden + block_hidden * D_out_p)
                 + 2 * b_itemsize * (block_hidden + D_out_p)
                 + 2 * out_itemsize * block_batch * D_out_p
                 + 4 * block_batch * (block_hidden + D_out_p))
        vmem_limit = int(min(vmem_cap - (4 << 20),
                             max(usage + (8 << 20), 32 << 20)))

        out = pl.pallas_call(
            _mlp_kernel_tiled,
            out_shape=jax.ShapeDtypeStruct((B_p, D_out_p), out_dtype),
            grid_spec=pltpu.PrefetchScalarGridSpec(
                num_scalar_prefetch=0,
                grid=(n_bt, n_ht),
                in_specs=[
                    pl.BlockSpec((block_batch, D_in), lambda i, h: (i, 0)),   # x tile
                    pl.BlockSpec((D_in, block_hidden), lambda i, h: (0, h)),  # W1[:, h]
                    pl.BlockSpec((1, block_hidden), lambda i, h: (0, h)),     # b1[h]
                    pl.BlockSpec((block_hidden, D_out_p), lambda i, h: (h, 0)),  # W2[h, :]
                    pl.BlockSpec((1, D_out_p), lambda i, h: (0, 0)),          # b2
                ],
                out_specs=pl.BlockSpec((block_batch, D_out_p), lambda i, h: (i, 0)),
                scratch_shapes=[pltpu.VMEM((block_batch, D_out_p), jnp.float32)],
            ),
            compiler_params=pltpu.CompilerParams(
                dimension_semantics=("parallel", "arbitrary"),
                vmem_limit_bytes=vmem_limit,
            ),
            cost_estimate=pl.CostEstimate(
                flops=flops, transcendentals=0, bytes_accessed=bytes_accessed),
        )(x, w1, b1, w2, b2)

    if B_p != B or D_out_p != D_out:
        out = out[:B, :D_out]
    return out


def init_mlp_params(key, input_dim, hidden_dim, output_dim, dtype=jnp.float32):
    """Deterministic init mimicking PyTorch nn.Linear default (uniform +/- 1/sqrt(fan_in))."""
    k1, k2, k3, k4 = jax.random.split(key, 4)
    bound1 = 1.0 / (input_dim ** 0.5)
    bound2 = 1.0 / (hidden_dim ** 0.5)
    w1 = jax.random.uniform(k1, (input_dim, hidden_dim), dtype, -bound1, bound1)
    b1 = jax.random.uniform(k2, (1, hidden_dim), dtype, -bound1, bound1)
    w2 = jax.random.uniform(k3, (hidden_dim, output_dim), dtype, -bound2, bound2)
    b2 = jax.random.uniform(k4, (1, output_dim), dtype, -bound2, bound2)
    return w1, b1, w2, b2


def _reference(x, w1, b1, w2, b2):
    return jnp.maximum(x @ w1 + b1, 0.0) @ w2 + b2


if __name__ == "__main__":
    key = jax.random.PRNGKey(0)

    # --- 1. Small shapes (resident path, D_out padded to 128 lanes) ---------
    batch, input_dim, hidden_dim, output_dim = 8, 32, 64, 16
    kx, kp, key = jax.random.split(key, 3)
    x = jax.random.normal(kx, (batch, input_dim), dtype=jnp.float32)
    w1, b1, w2, b2 = init_mlp_params(kp, input_dim, hidden_dim, output_dim)

    out = jax.block_until_ready(mlp_forward(x, w1, b1, w2, b2))
    ref = _reference(x, w1, b1, w2, b2)
    assert out.shape == (batch, output_dim)
    assert jnp.allclose(out, ref, atol=1e-5, rtol=1e-5), "mismatch (resident)"

    # --- 2. Forced tiled path: multiple batch tiles AND hidden steps --------
    B2, D2_in, H2, D2_out = 256, 128, 512, 128
    kx2, kp2, key = jax.random.split(key, 3)
    x2 = jax.random.normal(kx2, (B2, D2_in), dtype=jnp.float32)
    p2 = init_mlp_params(kp2, D2_in, H2, D2_out)

    out2 = jax.block_until_ready(
        mlp_forward(x2, *p2, block_batch=128, block_hidden=256))
    ref2 = _reference(x2, *p2)
    assert out2.shape == (B2, D2_out)
    assert jnp.allclose(out2, ref2, atol=1e-4, rtol=1e-4), "mismatch (tiled)"

    # --- 3. Non-divisible shapes: batch / hidden / out-dim padding ----------
    B3, D3_in, H3, D3_out = 100, 48, 300, 20
    kx3, kp3, key = jax.random.split(key, 3)
    x3 = jax.random.normal(kx3, (B3, D3_in), dtype=jnp.float32)
    p3 = init_mlp_params(kp3, D3_in, H3, D3_out)

    out3 = jax.block_until_ready(mlp_forward(x3, *p3, block_hidden=128))
    ref3 = _reference(x3, *p3)
    assert out3.shape == (B3, D3_out)
    assert jnp.allclose(out3, ref3, atol=1e-4, rtol=1e-4), "mismatch (padded)"

    # --- 4. bf16 compute path (f32 accumulation), loose tolerance -----------
    out4 = jax.block_until_ready(
        mlp_forward(x2, *p2, compute_dtype=jnp.bfloat16))
    assert out4.shape == (B2, D2_out)
    assert jnp.allclose(out4, ref2, atol=1e-1, rtol=1e-1), "mismatch (bf16)"

    print("KERNEL_OK")
</pallas_src>

<mosaic_0001>
module attributes {stable_mosaic.version = 11 : i64} {
  func.func @_mlp_kernel_resident(%arg0: i32, %arg1: memref<8x32xf32, #tpu.memory_space<vmem>>, %arg2: memref<32x64xf32, #tpu.memory_space<vmem>>, %arg3: memref<1x64xf32, #tpu.memory_space<vmem>>, %arg4: memref<64x128xf32, #tpu.memory_space<vmem>>, %arg5: memref<1x128xf32, #tpu.memory_space<vmem>>, %arg6: memref<8x128xf32, #tpu.memory_space<vmem>>) attributes {dimension_semantics = [#tpu.dimension_semantics<parallel>], iteration_bounds = array<i64: 1>, scalar_prefetch = 0 : i64, scratch_operands = 0 : i64, tpu.core_type = #tpu.core_type<tc>, window_params = [{transform_indices = @transform_0, window_bounds = array<i64: 8, 32>}, {pipeline_mode = #tpu.pipeline_mode<synchronous>, transform_indices = @transform_1, window_bounds = array<i64: 32, 64>}, {pipeline_mode = #tpu.pipeline_mode<synchronous>, transform_indices = @transform_2, window_bounds = array<i64: 1, 64>}, {pipeline_mode = #tpu.pipeline_mode<synchronous>, transform_indices = @transform_3, window_bounds = array<i64: 64, 128>}, {pipeline_mode = #tpu.pipeline_mode<synchronous>, transform_indices = @transform_4, window_bounds = array<i64: 1, 128>}, {transform_indices = @transform_5, window_bounds = array<i64: 8, 128>}]} {
    %c0 = arith.constant 0 : index
    %c0_0 = arith.constant 0 : index
    %0 = vector.load %arg1[%c0, %c0_0] : memref<8x32xf32, #tpu.memory_space<vmem>>, vector<8x32xf32>
    %c0_1 = arith.constant 0 : index
    %c0_2 = arith.constant 0 : index
    %1 = vector.load %arg2[%c0_1, %c0_2] : memref<32x64xf32, #tpu.memory_space<vmem>>, vector<32x64xf32>
    %cst = arith.constant dense<0.000000e+00> : vector<8x64xf32>
    %2 = tpu.matmul %0, %1, %cst {dimension_numbers = #tpu.dot_dimension_numbers<[1], [0], [0], [1], [0, 0, 1, 1], [], []>} : vector<8x32xf32>, vector<32x64xf32>, vector<8x64xf32> -> vector<8x64xf32>
    %c0_3 = arith.constant 0 : index
    %c0_4 = arith.constant 0 : index
    %3 = vector.load %arg3[%c0_3, %c0_4] : memref<1x64xf32, #tpu.memory_space<vmem>>, vector<1x64xf32>
    %4 = vector.broadcast %3 : vector<1x64xf32> to vector<8x64xf32>
    %5 = arith.addf %2, %4 : vector<8x64xf32>
    %cst_5 = arith.constant 0.000000e+00 : f32
    %6 = vector.broadcast %cst_5 : f32 to vector<8x64xf32>
    %7 = arith.maximumf %5, %6 : vector<8x64xf32>
    %c0_6 = arith.constant 0 : index
    %c0_7 = arith.constant 0 : index
    %8 = vector.load %arg4[%c0_6, %c0_7] : memref<64x128xf32, #tpu.memory_space<vmem>>, vector<64x128xf32>
    %cst_8 = arith.constant dense<0.000000e+00> : vector<8x128xf32>
    %9 = tpu.matmul %7, %8, %cst_8 {dimension_numbers = #tpu.dot_dimension_numbers<[1], [0], [0], [1], [0, 0, 1, 1], [], []>} : vector<8x64xf32>, vector<64x128xf32>, vector<8x128xf32> -> vector<8x128xf32>
    %c0_9 = arith.constant 0 : index
    %c0_10 = arith.constant 0 : index
    %10 = vector.load %arg5[%c0_9, %c0_10] : memref<1x128xf32, #tpu.memory_space<vmem>>, vector<1x128xf32>
    %11 = vector.broadcast %10 : vector<1x128xf32> to vector<8x128xf32>
    %12 = arith.addf %9, %11 : vector<8x128xf32>
    %c0_11 = arith.constant 0 : index
    %c0_12 = arith.constant 0 : index
    %13 = vector.load %arg6[%c0_11, %c0_12] : memref<8x128xf32, #tpu.memory_space<vmem>>, vector<8x128xf32>
    tpu.vector_store %arg6[%c0_11, %c0_12], %12 {strides = array<i32>} : memref<8x128xf32, #tpu.memory_space<vmem>>, vector<8x128xf32>,
    return
  }
  func.func @transform_0(%arg0: i32) -> (i32, i32) {
    %c0_i32 = arith.constant 0 : i32
    %c0_i32_0 = arith.constant 0 : i32
    return %arg0, %c0_i32 : i32, i32
  }
  func.func @transform_1(%arg0: i32) -> (i32, i32) {
    %c0_i32 = arith.constant 0 : i32
    %c0_i32_0 = arith.constant 0 : i32
    %c0_i32_1 = arith.constant 0 : i32
    return %c0_i32, %c0_i32_0 : i32, i32
  }
  func.func @transform_2(%arg0: i32) -> (i32, i32) {
    %c0_i32 = arith.constant 0 : i32
    %c0_i32_0 = arith.constant 0 : i32
    %c0_i32_1 = arith.constant 0 : i32
    return %c0_i32, %c0_i32_0 : i32, i32
  }
  func.func @transform_3(%arg0: i32) -> (i32, i32) {
    %c0_i32 = arith.constant 0 : i32
    %c0_i32_0 = arith.constant 0 : i32
    %c0_i32_1 = arith.constant 0 : i32
    return %c0_i32, %c0_i32_0 : i32, i32
  }
  func.func @transform_4(%arg0: i32) -> (i32, i32) {
    %c0_i32 = arith.constant 0 : i32
    %c0_i32_0 = arith.constant 0 : i32
    %c0_i32_1 = arith.constant 0 : i32
    return %c0_i32, %c0_i32_0 : i32, i32
  }
  func.func @transform_5(%arg0: i32) -> (i32, i32) {
    %c0_i32 = arith.constant 0 : i32
    %c0_i32_0 = arith.constant 0 : i32
    return %arg0, %c0_i32 : i32, i32
  }
}

</mosaic_0001>

<llo_original>
// kernel: tpu_custom_call.1
$region0: #{tpu_custom_call.1}
  #allocation0 [shape = 'u32[]', space=smem, size = 0x4, offset = 0x4, fixed_abs, tag = 'smem constant byte address 0x4 - core index']
  #allocation1 [shape = 'u32[144,128]{1,0:T(1,128)}', space=vmem, size = 0x12000, scoped, tag = 'internal scratch']
  %s0 = inlined_call_operand.hbm [shape: f32[8,32], index: 0, kind: input, shape index: {}]
  %s1 = inlined_call_operand.hbm [shape: f32[32,64], index: 1, kind: input, shape index: {}]
  %s2 = inlined_call_operand.vmem [shape: f32[1,64], index: 2, kind: input, shape index: {}]
  %s3 = inlined_call_operand.hbm [shape: f32[64,128], index: 3, kind: input, shape index: {}]
  %s4 = inlined_call_operand.vmem [shape: f32[1,128], index: 4, kind: input, shape index: {}]
  %s5 = inlined_call_operand.hbm [shape: f32[8,128], index: 5, kind: output, shape index: {}]
  %s6 = sld [smem:[#allocation0]]
  $region42: #{tpu_custom_call.1} parent=0
    _
  %s8 = ssub.s32 1, %s6
  %s9 = scalar_select 0, %s8, %s6
  $region1: #{tpu_custom_call.1} parent=0
    #allocation2 [shape = 'u8[4096]{0}', space=vmem, size = 0x1000, scoped, tag = 'input window, operand 0, single buffered']
    #allocation3 [shape = 's32[1]{0}', space=sflag, size = 0x4, scoped, tag = 'scoped memory for tpu_custom_call.1']
    #allocation4 [shape = 's32[1]{0}', space=sflag, size = 0x4, scoped, tag = 'scoped memory for tpu_custom_call.1']
    #allocation5 [shape = 'u8[16384]{0}', space=vmem, size = 0x4000, scoped, tag = 'input window, operand 1, single buffered']
    #allocation6 [shape = 's32[1]{0}', space=sflag, size = 0x4, scoped, tag = 'scoped memory for tpu_custom_call.1']
    #allocation7 [shape = 'u8[32768]{0}', space=vmem, size = 0x8000, scoped, tag = 'input window, operand 3, single buffered']
    #allocation8 [shape = 'u8[4096]{0}', space=vmem, size = 0x1000, scoped, tag = 'output window, operand 0, single buffered']
    %10 = vsyncpa [#allocation3], 0
    %11 = vsyncpa [#allocation6], 0
    %12 = vsyncpa [#allocation4], 0
    // Predicated region
    $region2: #{tpu_custom_call.1} parent=1 // pred_check
      _
    $region3: #{tpu_custom_call.1} parent=1 // pred_check_branch
      %14 = sbr.rel (0) target = $region5
    $region4: #{tpu_custom_call.1} parent=1 // pred_region
      %s16 = ssub.s32 128, 128
      %17 = vsyncadd [#allocation3], %s16
      %s19 = sshll.u32 [#allocation2], 4
      %s20 = int_to_ptr.vmem [resolvable:$true] %s19
      %22 = dma.hbm_to_vmem [thread:$0]  %s0, 128, %s20, [#allocation3]
    $region5: #{tpu_custom_call.1} parent=1 // pred_fallthru
      _
    // Predicated region
    $region6: #{tpu_custom_call.1} parent=1 // pred_check
      _
    $region7: #{tpu_custom_call.1} parent=1 // pred_check_branch
      %24 = sbr.rel (0) target = $region9
    $region8: #{tpu_custom_call.1} parent=1 // pred_region
      %s26 = ssub.s32 512, 512
      %27 = vsyncadd [#allocation6], %s26
      %s28 = sshll.u32 [#allocation5], 4
      %s29 = int_to_ptr.vmem [resolvable:$true] %s28
      %34 = dma.hbm_to_vmem [thread:$0]  %s1, 512, %s29, [#allocation6], 128, 128, 8
    $region9: #{tpu_custom_call.1} parent=1 // pred_fallthru
      _
    // Predicated region
    $region10: #{tpu_custom_call.1} parent=1 // pred_check
      _
    $region11: #{tpu_custom_call.1} parent=1 // pred_check_branch
      %36 = sbr.rel (0) target = $region13
    $region12: #{tpu_custom_call.1} parent=1 // pred_region
      _
    $region13: #{tpu_custom_call.1} parent=1 // pred_fallthru
      _
    // Predicated region
    $region14: #{tpu_custom_call.1} parent=1 // pred_check
      _
    $region15: #{tpu_custom_call.1} parent=1 // pred_check_branch
      %38 = sbr.rel (0) target = $region17
    $region16: #{tpu_custom_call.1} parent=1 // pred_region
      %s40 = ssub.s32 1024, 1024
      %41 = vsyncadd [#allocation6], %s40
      %s42 = sshll.u32 [#allocation7], 4
      %s43 = int_to_ptr.vmem [resolvable:$true] %s42
      %48 = dma.hbm_to_vmem [thread:$0]  %s3, 1024, %s43, [#allocation6], 128, 128, 8
    $region17: #{tpu_custom_call.1} parent=1 // pred_fallthru
      _
    // Predicated region
    $region18: #{tpu_custom_call.1} parent=1 // pred_check
      _
    $region19: #{tpu_custom_call.1} parent=1 // pred_check_branch
      %50 = sbr.rel (0) target = $region21
    $region20: #{tpu_custom_call.1} parent=1 // pred_region
      _
    $region21: #{tpu_custom_call.1} parent=1 // pred_fallthru
      _
    // Predicated region
    $region22: #{tpu_custom_call.1} parent=1 // pred_check
      _
    $region23: #{tpu_custom_call.1} parent=1 // pred_check_branch
      %52 = sbr.rel (0) target = $region25
    $region24: #{tpu_custom_call.1} parent=1 // pred_region
      %53 = dma.done [#allocation3], 128
    $region25: #{tpu_custom_call.1} parent=1 // pred_fallthru
      _
    // Predicated region
    $region26: #{tpu_custom_call.1} parent=1 // pred_check
      _
    $region27: #{tpu_custom_call.1} parent=1 // pred_check_branch
      %55 = sbr.rel (0) target = $region29
    $region28: #{tpu_custom_call.1} parent=1 // pred_region
      %56 = dma.done [#allocation6], 512
    $region29: #{tpu_custom_call.1} parent=1 // pred_fallthru
      _
    // Predicated region
    $region30: #{tpu_custom_call.1} parent=1 // pred_check
      _
    $region31: #{tpu_custom_call.1} parent=1 // pred_check_branch
      %58 = sbr.rel (0) target = $region33
    $region32: #{tpu_custom_call.1} parent=1 // pred_region
      %59 = dma.done [#allocation6], 1024
    $region33: #{tpu_custom_call.1} parent=1 // pred_fallthru
      _
    %v60 = vld [vmem:[#allocation2] sm:$0xff]
    %v61 = vld [vmem:[#allocation5] sm:$0xff]
    %v62 = vld [vmem:[#allocation5 + $0x8] sm:$0xff]
    %v63 = vld [vmem:[#allocation5 + $0x10] sm:$0xff]
    %v64 = vld [vmem:[#allocation5 + $0x18] sm:$0xff]
    %v65 = vld [vmem:[%s2] sm:$0x1]
    %v67 = vlaneseq
    %v68 = vshrl.u32 %v67, 7
    %v69 = vsub.s32 0, %v68
    %v70 = vrot.slane %v65, %v69
    %vm72 = vcmask 261120
    %v74 = vsel %vm72, %v60, 0
    %76 = vmatprep.subr.mxu0 0.0
    %77 = vmatpush1.msra.mxu0 0.0
    %78 = vmatprep.subr.mxu0 0.0
    %79 = vmatpush1.msra.mxu0 0.0
    %80 = vmatprep.subr.mxu0 0.0
    %81 = vmatpush1.msra.mxu0 0.0
    %82 = vmatprep.subr.mxu0 0.0
    %83 = vmatpush1.msra.mxu0 0.0
    %84 = vmatprep.subr.mxu0 0.0
    %85 = vmatpush1.msra.mxu0 0.0
    %86 = vmatprep.subr.mxu0 0.0
    %87 = vmatpush1.msra.mxu0 0.0
    %88 = vmatprep.subr.mxu0 0.0
    %89 = vmatpush1.msra.mxu0 0.0
    %90 = vmatprep.subr.mxu0 0.0
    %91 = vmatpush1.msra.mxu0 0.0
    %92 = vmatprep.subr.mxu0 0.0
    %93 = vmatpush1.msra.mxu0 0.0
    %94 = vmatprep.subr.mxu0 0.0
    %95 = vmatpush1.msra.mxu0 0.0
    %96 = vmatprep.subr.mxu0 0.0
    %97 = vmatpush1.msra.mxu0 0.0
    %98 = vmatprep.subr.mxu0 0.0
    %99 = vmatpush1.msra.mxu0 0.0
    %100 = vmatprep.subr.mxu0 0.0
    %101 = vmatpush1.msra.mxu0 %v64
    %102 = vmatprep.subr.mxu0 0.0
    %103 = vmatpush1.msra.mxu0 %v63
    %104 = vmatprep.subr.mxu0 0.0
    %105 = vmatpush1.msra.mxu0 %v62
    %106 = vmatprep.subr.mxu0 0.0
    %107 = vmatpush1.msra.mxu0 %v61
    %108 = vmatprep.subr.mxu0 0.0
    %109 = vmatpush2.msra.mxu0 0.0
    %110 = vmatprep.subr.mxu0 0.0
    %111 = vmatpush2.msra.mxu0 0.0
    %112 = vmatprep.subr.mxu0 0.0
    %113 = vmatpush2.msra.mxu0 0.0
    %114 = vmatprep.subr.mxu0 0.0
    %115 = vmatpush2.msra.mxu0 0.0
    %116 = vmatprep.subr.mxu0 0.0
    %117 = vmatpush2.msra.mxu0 0.0
    %118 = vmatprep.subr.mxu0 0.0
    %119 = vmatpush2.msra.mxu0 0.0
    %120 = vmatprep.subr.mxu0 0.0
    %121 = vmatpush2.msra.mxu0 0.0
    %122 = vmatprep.subr.mxu0 0.0
    %123 = vmatpush2.msra.mxu0 0.0
    %124 = vmatprep.subr.mxu0 0.0
    %125 = vmatpush2.msra.mxu0 0.0
    %126 = vmatprep.subr.mxu0 0.0
    %127 = vmatpush2.msra.mxu0 0.0
    %128 = vmatprep.subr.mxu0 0.0
    %129 = vmatpush2.msra.mxu0 0.0
    %130 = vmatprep.subr.mxu0 0.0
    %131 = vmatpush2.msra.mxu0 0.0
    %132 = vmatprep.subr.mxu0 0.0
    %133 = vmatpush2.msra.mxu0 0.0
    %134 = vmatprep.subr.mxu0 0.0
    %135 = vmatpush2.msra.mxu0 0.0
    %136 = vmatprep.subr.mxu0 0.0
    %137 = vmatpush2.msra.mxu0 0.0
    %138 = vmatprep.subr.mxu0 0.0
    %139 = vmatpush2.msra.mxu0 0.0
    %140 = vmatprep.mubr.f32.mxu0 0.0
    %141 = vmatmul.mubr.f32.gmra.mxu0 %v74
    %v142 = vpop.f32.mrf.mxu0
    %v143 = vadd.f32 %v70, %v142
    %v144 = vpop.f32.mrf.mxu0
    %145 = vdwg.mxu0
    %v146 = vmax.f32 %v143, 0.0
    %v147 = vld [vmem:[#allocation7] sm:$0xff]
    %v148 = vld [vmem:[#allocation7 + $0x8] sm:$0xff]
    %v149 = vld [vmem:[#allocation7 + $0x10] sm:$0xff]
    %v150 = vld [vmem:[#allocation7 + $0x18] sm:$0xff]
    %v151 = vld [vmem:[#allocation7 + $0x20] sm:$0xff]
    %v152 = vld [vmem:[#allocation7 + $0x28] sm:$0xff]
    %v153 = vld [vmem:[#allocation7 + $0x30] sm:$0xff]
    %v154 = vld [vmem:[#allocation7 + $0x38] sm:$0xff]
    %v155 = vld [vmem:[%s4] sm:$0x1]
    %v157 = vlaneseq
    %v158 = vshrl.u32 %v157, 7
    %v159 = vsub.s32 0, %v158
    %v160 = vrot.slane %v155, %v159
    %vm162 = vcmask 523264
    %v164 = vsel %vm162, %v146, 0
    %166 = vmatprep.subr.mxu0 0.0
    %167 = vmatpush1.msra.mxu0 0.0
    %168 = vmatprep.subr.mxu0 0.0
    %169 = vmatpush1.msra.mxu0 0.0
    %170 = vmatprep.subr.mxu0 0.0
    %171 = vmatpush1.msra.mxu0 0.0
    %172 = vmatprep.subr.mxu0 0.0
    %173 = vmatpush1.msra.mxu0 0.0
    %174 = vmatprep.subr.mxu0 0.0
    %175 = vmatpush1.msra.mxu0 0.0
    %176 = vmatprep.subr.mxu0 0.0
    %177 = vmatpush1.msra.mxu0 0.0
    %178 = vmatprep.subr.mxu0 0.0
    %179 = vmatpush1.msra.mxu0 0.0
    %180 = vmatprep.subr.mxu0 0.0
    %181 = vmatpush1.msra.mxu0 0.0
    %182 = vmatprep.subr.mxu0 0.0
    %183 = vmatpush1.msra.mxu0 %v154
    %184 = vmatprep.subr.mxu0 0.0
    %185 = vmatpush1.msra.mxu0 %v153
    %186 = vmatprep.subr.mxu0 0.0
    %187 = vmatpush1.msra.mxu0 %v152
    %188 = vmatprep.subr.mxu0 0.0
    %189 = vmatpush1.msra.mxu0 %v151
    %190 = vmatprep.subr.mxu0 0.0
    %191 = vmatpush1.msra.mxu0 %v150
    %192 = vmatprep.subr.mxu0 0.0
    %193 = vmatpush1.msra.mxu0 %v149
    %194 = vmatprep.subr.mxu0 0.0
    %195 = vmatpush1.msra.mxu0 %v148
    %196 = vmatprep.subr.mxu0 0.0
    %197 = vmatpush1.msra.mxu0 %v147
    %198 = vmatprep.subr.mxu0 0.0
    %199 = vmatpush2.msra.mxu0 0.0
    %200 = vmatprep.subr.mxu0 0.0
    %201 = vmatpush2.msra.mxu0 0.0
    %202 = vmatprep.subr.mxu0 0.0
    %203 = vmatpush2.msra.mxu0 0.0
    %204 = vmatprep.subr.mxu0 0.0
    %205 = vmatpush2.msra.mxu0 0.0
    %206 = vmatprep.subr.mxu0 0.0
    %207 = vmatpush2.msra.mxu0 0.0
    %208 = vmatprep.subr.mxu0 0.0
    %209 = vmatpush2.msra.mxu0 0.0
    %210 = vmatprep.subr.mxu0 0.0
    %211 = vmatpush2.msra.mxu0 0.0
    %212 = vmatprep.subr.mxu0 0.0
    %213 = vmatpush2.msra.mxu0 0.0
    %214 = vmatprep.subr.mxu0 0.0
    %215 = vmatpush2.msra.mxu0 0.0
    %216 = vmatprep.subr.mxu0 0.0
    %217 = vmatpush2.msra.mxu0 0.0
    %218 = vmatprep.subr.mxu0 0.0
    %219 = vmatpush2.msra.mxu0 0.0
    %220 = vmatprep.subr.mxu0 0.0
    %221 = vmatpush2.msra.mxu0 0.0
    %222 = vmatprep.subr.mxu0 0.0
    %223 = vmatpush2.msra.mxu0 0.0
    %224 = vmatprep.subr.mxu0 0.0
    %225 = vmatpush2.msra.mxu0 0.0
    %226 = vmatprep.subr.mxu0 0.0
    %227 = vmatpush2.msra.mxu0 0.0
    %228 = vmatprep.subr.mxu0 0.0
    %229 = vmatpush2.msra.mxu0 0.0
    %230 = vmatprep.mubr.f32.mxu0 0.0
    %231 = vmatmul.mubr.f32.gmra.mxu0 %v164
    %v232 = vpop.f32.mrf.mxu0
    %v233 = vadd.f32 %v160, %v232
    %v234 = vpop.f32.mrf.mxu0
    %235 = vdwg.mxu0
    %236 = vst [vmem:[#allocation8] sm:$0xff] %v233
    // Predicated region
    $region34: #{tpu_custom_call.1} parent=1 // pred_check
      _
    $region35: #{tpu_custom_call.1} parent=1 // pred_check_branch
      %238 = sbr.rel (0) target = $region37
    $region36: #{tpu_custom_call.1} parent=1 // pred_region
      %s240 = ssub.s32 128, 128
      %241 = vsyncadd [#allocation4], %s240
      %s243 = sshll.u32 [#allocation8], 4
      %s244 = int_to_ptr.vmem [resolvable:$true] %s243
      %246 = dma.vmem_to_hbm [thread:$0]  %s244, 128, %s5, [#allocation4]
    $region37: #{tpu_custom_call.1} parent=1 // pred_fallthru
      _
    // Predicated region
    $region38: #{tpu_custom_call.1} parent=1 // pred_check
      _
    $region39: #{tpu_custom_call.1} parent=1 // pred_check_branch
      %248 = sbr.rel (0) target = $region41
    $region40: #{tpu_custom_call.1} parent=1 // pred_region
      %249 = dma.done [#allocation4], 128
    $region41: #{tpu_custom_call.1} parent=1 // pred_fallthru
      _
    %250 = vsyncpa [#allocation3], 1
    %251 = vsyncpa [#allocation6], 1
    %252 = vsyncpa [#allocation4], 1

</llo_original>
